<compile_context>
chip_gen: v5e
topology: v5e:2x2
jax: 0.10.0
libtpu: 0.0.40
codegen_flags: <defaults>
</compile_context>

<pallas_src>
import functools

import jax
import jax.numpy as jnp
from jax import lax
from jax.experimental import pallas as pl
from jax.experimental.pallas import tpu as pltpu

SIGMA = 0.0  # module attribute self.sigma = 0.0

# Contract K of x (axis 1) with K of W (axis 1): y = x @ W.T, no host transpose.
_DOT_T = (((1,), (1,)), ((), ()))


# ---------------------------------------------------------------------------
# Kernels
# ---------------------------------------------------------------------------
def _linear_1k_kernel(x_ref, w_ref, b_ref, o_ref):
    """sigma == 0, K fits in a single tile: no scratch, no phases."""
    y = lax.dot_general(x_ref[...], w_ref[...], _DOT_T,
                        preferred_element_type=jnp.float32)
    o_ref[...] = (y + b_ref[...]).astype(o_ref.dtype)


def _linear_mk_kernel(x_ref, w_ref, b_ref, o_ref, acc_ref):
    """sigma == 0, tiled K reduction with an f32 VMEM accumulator."""
    @pl.when(pl.program_id(2) == 0)
    def _():
        acc_ref[...] = jnp.zeros_like(acc_ref)

    acc_ref[...] += lax.dot_general(x_ref[...], w_ref[...], _DOT_T,
                                    preferred_element_type=jnp.float32)

    @pl.when(pl.program_id(2) == pl.num_programs(2) - 1)
    def _():
        o_ref[...] = (acc_ref[...] + b_ref[...]).astype(o_ref.dtype)


def _noisy_1k_kernel(sigma, x_ref, w_ref, nw_ref, b_ref, nb_ref, o_ref):
    """sigma != 0, single K step: noisy weights built on the VPU in-kernel."""
    w_eff = w_ref[...] + sigma * nw_ref[...]              # (tn, tk)
    y = lax.dot_general(x_ref[...], w_eff, _DOT_T,
                        preferred_element_type=jnp.float32)
    o_ref[...] = (y + b_ref[...] + sigma * nb_ref[...]).astype(o_ref.dtype)


def _noisy_mk_kernel(sigma, x_ref, w_ref, nw_ref, b_ref, nb_ref, o_ref, acc_ref):
    """sigma != 0, tiled K reduction."""
    @pl.when(pl.program_id(2) == 0)
    def _():
        acc_ref[...] = jnp.zeros_like(acc_ref)

    w_eff = w_ref[...] + sigma * nw_ref[...]
    acc_ref[...] += lax.dot_general(x_ref[...], w_eff, _DOT_T,
                                    preferred_element_type=jnp.float32)

    @pl.when(pl.program_id(2) == pl.num_programs(2) - 1)
    def _():
        b_eff = b_ref[...] + sigma * nb_ref[...]
        o_ref[...] = (acc_ref[...] + b_eff).astype(o_ref.dtype)


# ---------------------------------------------------------------------------
# Wrapper (layout plumbing: pad only if unaligned / tile / un-pad)
# ---------------------------------------------------------------------------
def _pad_axis(a, axis, multiple):
    pad = (-a.shape[axis]) % multiple
    if pad == 0:
        return a                       # trace-time no-op for aligned shapes
    widths = [(0, 0)] * a.ndim
    widths[axis] = (0, pad)
    return jnp.pad(a, widths)


def _pick_tile(padded, target, quantum):
    """Largest tile <= target that divides `padded` and is a multiple of quantum."""
    t = min(padded, target)
    t -= t % quantum
    t = max(t, quantum)
    while padded % t:
        t -= quantum
    return t


def noise_linear(x, weight, bias, noise_w=None, noise_b=None, sigma=SIGMA):
    """x: (B, in), weight: (out, in), bias: (out,), noise_*: param shapes."""
    B, K = x.shape
    N = weight.shape[0]

    # Zero-pad to lane-dense shapes (no-ops when already aligned). W is NOT
    # transposed — the kernel contracts its last axis directly.
    x_p = _pad_axis(_pad_axis(x, 0, 8), 1, 128)              # (Mp, Kp)
    w_p = _pad_axis(_pad_axis(weight, 0, 128), 1, 128)       # (Np, Kp)
    b_p = _pad_axis(bias.reshape(1, N), 1, 128)              # (1,  Np)

    Mp, Kp = x_p.shape
    Np = w_p.shape[0]

    tm = _pick_tile(Mp, 256, 8)
    tk = _pick_tile(Kp, 2048, 128)     # big K target: most layers -> 1 K step
    tn = _pick_tile(Np, 512, 128)

    # v7x has 2 TensorCores: ensure at least one parallel axis has >= 2 blocks.
    if (Mp // tm) * (Np // tn) < 2:
        if Np >= 256:
            tn = _pick_tile(Np, Np // 2, 128)
        elif Mp >= 16:
            tm = _pick_tile(Mp, Mp // 2, 8)

    k_steps = Kp // tk
    multi_k = k_steps > 1
    noisy = sigma != 0.0

    if multi_k:
        grid = (Mp // tm, Np // tn, k_steps)
        x_spec = pl.BlockSpec((tm, tk), lambda i, j, k: (i, k))
        w_spec = pl.BlockSpec((tn, tk), lambda i, j, k: (j, k))
        b_spec = pl.BlockSpec((1, tn), lambda i, j, k: (0, j))
        o_spec = pl.BlockSpec((tm, tn), lambda i, j, k: (i, j))
        sem = ("parallel", "parallel", "arbitrary")
        scratch = [pltpu.VMEM((tm, tn), jnp.float32)]
    else:
        grid = (Mp // tm, Np // tn)
        x_spec = pl.BlockSpec((tm, tk), lambda i, j: (i, 0))
        w_spec = pl.BlockSpec((tn, tk), lambda i, j: (j, 0))
        b_spec = pl.BlockSpec((1, tn), lambda i, j: (0, j))
        o_spec = pl.BlockSpec((tm, tn), lambda i, j: (i, j))
        sem = ("parallel", "parallel")
        scratch = []

    # Explicit VMEM budget (double-buffered operands + output + accumulator).
    n_wlike = 2 if noisy else 1
    elems_in = tm * tk + n_wlike * (tn * tk + tn)
    elems_out = tm * tn
    needed = (2 * (elems_in + elems_out) + (tm * tn if multi_k else 0)) * 4
    vmem_limit = min(48 * 1024 * 1024, max(32 * 1024 * 1024, int(needed * 1.5)))

    compiler_params = pltpu.CompilerParams(
        dimension_semantics=sem, vmem_limit_bytes=vmem_limit)

    cost = pl.CostEstimate(
        flops=2 * Mp * Kp * Np,
        transcendentals=0,
        bytes_accessed=(Mp * Kp + n_wlike * (Np * Kp + Np) + Mp * Np) * 4)

    out_shape = jax.ShapeDtypeStruct((Mp, Np), x.dtype)

    if not noisy:
        # Trace-time specialization: drop the dead noise operands entirely.
        kernel = _linear_mk_kernel if multi_k else _linear_1k_kernel
        in_specs = [x_spec, w_spec, b_spec]
        operands = (x_p, w_p, b_p)
    else:
        nw_p = _pad_axis(_pad_axis(noise_w, 0, 128), 1, 128)     # (Np, Kp)
        nb_p = _pad_axis(noise_b.reshape(1, N), 1, 128)          # (1,  Np)
        base = _noisy_mk_kernel if multi_k else _noisy_1k_kernel
        kernel = functools.partial(base, float(sigma))
        in_specs = [x_spec, w_spec, w_spec, b_spec, b_spec]
        operands = (x_p, w_p, nw_p, b_p, nb_p)

    y_p = pl.pallas_call(
        kernel,
        out_shape=out_shape,
        grid_spec=pltpu.PrefetchScalarGridSpec(
            num_scalar_prefetch=0,
            grid=grid,
            in_specs=in_specs,
            out_specs=o_spec,
            scratch_shapes=scratch),
        compiler_params=compiler_params,
        cost_estimate=cost,
    )(*operands)

    if (Mp, Np) == (B, N):
        return y_p                     # no pad -> no slice round-trip
    return y_p[:B, :N]


# ---------------------------------------------------------------------------
# Self-test
# ---------------------------------------------------------------------------
if __name__ == "__main__":
    key = jax.random.PRNGKey(0)
    keys = jax.random.split(key, 11)
    (k_x, k_w, k_b, k_nw, k_nb, k_x2, k_w2, k_b2, k_x3, k_w3, k_b3) = keys

    # --- Small shapes matching the module's typical use (sigma = 0 path) ---
    batch, in_size, out_size = 8, 32, 32
    x = jax.random.normal(k_x, (batch, in_size), dtype=jnp.float32)
    bound = 1.0 / (in_size ** 0.5)
    weight = jax.random.uniform(k_w, (out_size, in_size), jnp.float32, -bound, bound)
    bias = jax.random.uniform(k_b, (out_size,), jnp.float32, -bound, bound)

    y = jax.block_until_ready(noise_linear(x, weight, bias))
    y_ref = jnp.dot(x, weight.T, precision="highest") + bias
    assert y.shape == (batch, out_size)
    assert jnp.allclose(y, y_ref, atol=1e-5, rtol=1e-5)

    # --- General sigma != 0 path (noisy weights built inside the kernel) ---
    # TODO(synk): torch.randn_like noise sampling stays outside the kernel
    # (plain JAX RNG glue); with sigma == 0 it is elided entirely.
    noise_w = jax.random.normal(k_nw, (out_size, in_size), dtype=jnp.float32)
    noise_b = jax.random.normal(k_nb, (out_size,), dtype=jnp.float32)
    sig = 0.5
    y_n = jax.block_until_ready(
        noise_linear(x, weight, bias, noise_w, noise_b, sigma=sig))
    y_n_ref = (jnp.dot(x, (weight + sig * noise_w).T, precision="highest")
               + (bias + sig * noise_b))
    assert jnp.allclose(y_n, y_n_ref, atol=1e-5, rtol=1e-5)

    # --- Aligned larger layer: single-K-step fast path + 2-block N split ---
    B2, K2, N2 = 32, 1024, 256
    x2 = jax.random.normal(k_x2, (B2, K2), dtype=jnp.float32)
    w2 = jax.random.normal(k_w2, (N2, K2), dtype=jnp.float32) * 0.02
    b2 = jax.random.normal(k_b2, (N2,), dtype=jnp.float32) * 0.02
    y2 = jax.block_until_ready(noise_linear(x2, w2, b2))
    y2_ref = jnp.dot(x2, w2.T, precision="highest") + b2
    assert jnp.allclose(y2, y2_ref, atol=1e-4, rtol=1e-4)

    # --- K > 2048 to exercise the multi-K accumulator path ---
    B3, K3, N3 = 16, 4096, 512
    x3 = jax.random.normal(k_x3, (B3, K3), dtype=jnp.float32)
    w3 = jax.random.normal(k_w3, (N3, K3), dtype=jnp.float32) * 0.02
    b3 = jax.random.normal(k_b3, (N3,), dtype=jnp.float32) * 0.02
    y3 = jax.block_until_ready(noise_linear(x3, w3, b3))
    y3_ref = jnp.dot(x3, w3.T, precision="highest") + b3
    assert jnp.allclose(y3, y3_ref, atol=2e-4, rtol=2e-4)

    print("KERNEL_OK")
</pallas_src>

<mosaic_0001>
module attributes {stable_mosaic.version = 11 : i64} {
  func.func @_linear_1k_kernel(%arg0: i32, %arg1: i32, %arg2: memref<8x128xf32, #tpu.memory_space<vmem>>, %arg3: memref<128x128xf32, #tpu.memory_space<vmem>>, %arg4: memref<1x128xf32, #tpu.memory_space<vmem>>, %arg5: memref<8x128xf32, #tpu.memory_space<vmem>>) attributes {dimension_semantics = [#tpu.dimension_semantics<parallel>, #tpu.dimension_semantics<parallel>], iteration_bounds = array<i64: 1, 1>, scalar_prefetch = 0 : i64, scratch_operands = 0 : i64, tpu.core_type = #tpu.core_type<tc>, window_params = [{transform_indices = @transform_0, window_bounds = array<i64: 8, 128>}, {transform_indices = @transform_1, window_bounds = array<i64: 128, 128>}, {transform_indices = @transform_2, window_bounds = array<i64: 1, 128>}, {transform_indices = @transform_3, window_bounds = array<i64: 8, 128>}]} {
    %c0 = arith.constant 0 : index
    %c0_0 = arith.constant 0 : index
    %0 = vector.load %arg2[%c0, %c0_0] : memref<8x128xf32, #tpu.memory_space<vmem>>, vector<8x128xf32>
    %c0_1 = arith.constant 0 : index
    %c0_2 = arith.constant 0 : index
    %1 = vector.load %arg3[%c0_1, %c0_2] : memref<128x128xf32, #tpu.memory_space<vmem>>, vector<128x128xf32>
    %cst = arith.constant dense<0.000000e+00> : vector<8x128xf32>
    %2 = tpu.matmul %0, %1, %cst {dimension_numbers = #tpu.dot_dimension_numbers<[1], [1], [0], [0], [0, 0, 1, 0], [], []>} : vector<8x128xf32>, vector<128x128xf32>, vector<8x128xf32> -> vector<8x128xf32>
    %c0_3 = arith.constant 0 : index
    %c0_4 = arith.constant 0 : index
    %3 = vector.load %arg4[%c0_3, %c0_4] : memref<1x128xf32, #tpu.memory_space<vmem>>, vector<1x128xf32>
    %4 = vector.broadcast %3 : vector<1x128xf32> to vector<8x128xf32>
    %5 = arith.addf %2, %4 : vector<8x128xf32>
    %c0_5 = arith.constant 0 : index
    %c0_6 = arith.constant 0 : index
    %6 = vector.load %arg5[%c0_5, %c0_6] : memref<8x128xf32, #tpu.memory_space<vmem>>, vector<8x128xf32>
    tpu.vector_store %arg5[%c0_5, %c0_6], %5 {strides = array<i32>} : memref<8x128xf32, #tpu.memory_space<vmem>>, vector<8x128xf32>,
    return
  }
  func.func @transform_0(%arg0: i32, %arg1: i32) -> (i32, i32) {
    %c0_i32 = arith.constant 0 : i32
    %c0_i32_0 = arith.constant 0 : i32
    return %arg0, %c0_i32 : i32, i32
  }
  func.func @transform_1(%arg0: i32, %arg1: i32) -> (i32, i32) {
    %c0_i32 = arith.constant 0 : i32
    %c0_i32_0 = arith.constant 0 : i32
    return %arg1, %c0_i32 : i32, i32
  }
  func.func @transform_2(%arg0: i32, %arg1: i32) -> (i32, i32) {
    %c0_i32 = arith.constant 0 : i32
    %c0_i32_0 = arith.constant 0 : i32
    return %c0_i32, %arg1 : i32, i32
  }
  func.func @transform_3(%arg0: i32, %arg1: i32) -> (i32, i32) {
    %c0_i32 = arith.constant 0 : i32
    return %arg0, %arg1 : i32, i32
  }
}

</mosaic_0001>

<llo_original>
// kernel: tpu_custom_call.1
$region0: #{tpu_custom_call.1}
  #allocation0 [shape = 'u32[]', space=smem, size = 0x4, offset = 0x4, fixed_abs, tag = 'smem constant byte address 0x4 - core index']
  #allocation1 [shape = 'u32[72,128]{1,0:T(1,128)}', space=vmem, size = 0x9000, scoped, tag = 'internal scratch']
  %s0 = inlined_call_operand.hbm [shape: f32[8,128], index: 0, kind: input, shape index: {}]
  %s1 = inlined_call_operand.hbm [shape: f32[128,128], index: 1, kind: input, shape index: {}]
  %s2 = inlined_call_operand.vmem [shape: f32[1,128], index: 2, kind: input, shape index: {}]
  %s3 = inlined_call_operand.hbm [shape: f32[8,128], index: 3, kind: output, shape index: {}]
  %s4 = sld [smem:[#allocation0]]
  $region30: #{tpu_custom_call.1} parent=0
    _
  %s6 = ssub.s32 1, %s4
  %s7 = scalar_select 0, %s6, %s4
  $region1: #{tpu_custom_call.1} parent=0
    #allocation2 [shape = 'u8[4096]{0}', space=vmem, size = 0x1000, scoped, tag = 'input window, operand 0, single buffered']
    #allocation3 [shape = 's32[1]{0}', space=sflag, size = 0x4, scoped, tag = 'scoped memory for tpu_custom_call.1']
    #allocation4 [shape = 's32[1]{0}', space=sflag, size = 0x4, scoped, tag = 'scoped memory for tpu_custom_call.1']
    #allocation5 [shape = 'u8[65536]{0}', space=vmem, size = 0x10000, scoped, tag = 'input window, operand 1, single buffered']
    #allocation6 [shape = 's32[1]{0}', space=sflag, size = 0x4, scoped, tag = 'scoped memory for tpu_custom_call.1']
    #allocation7 [shape = 'u8[4096]{0}', space=vmem, size = 0x1000, scoped, tag = 'output window, operand 0, single buffered']
    %8 = vsyncpa [#allocation3], 0
    %9 = vsyncpa [#allocation6], 0
    %10 = vsyncpa [#allocation4], 0
    // Predicated region
    $region2: #{tpu_custom_call.1} parent=1 // pred_check
      _
    $region3: #{tpu_custom_call.1} parent=1 // pred_check_branch
      %12 = sbr.rel (0) target = $region5
    $region4: #{tpu_custom_call.1} parent=1 // pred_region
      %14 = vsyncadd [#allocation3], 0
      %s16 = sshll.u32 %s0, 4
      %s17 = int_to_ptr.hbm [resolvable:$true] %s16
      %s18 = sshll.u32 [#allocation2], 4
      %s19 = int_to_ptr.vmem [resolvable:$true] %s18
      %21 = dma.hbm_to_vmem [thread:$0]  %s17, 128, %s19, [#allocation3]
    $region5: #{tpu_custom_call.1} parent=1 // pred_fallthru
      _
    // Predicated region
    $region6: #{tpu_custom_call.1} parent=1 // pred_check
      _
    $region7: #{tpu_custom_call.1} parent=1 // pred_check_branch
      %23 = sbr.rel (0) target = $region9
    $region8: #{tpu_custom_call.1} parent=1 // pred_region
      %25 = vsyncadd [#allocation6], 0
      %s26 = sshll.u32 %s1, 4
      %s27 = int_to_ptr.hbm [resolvable:$true] %s26
      %s28 = sshll.u32 [#allocation5], 4
      %s29 = int_to_ptr.vmem [resolvable:$true] %s28
      %34 = dma.hbm_to_vmem [thread:$0]  %s27, 2048, %s29, [#allocation6], 128, 128, 8
    $region9: #{tpu_custom_call.1} parent=1 // pred_fallthru
      _
    // Predicated region
    $region10: #{tpu_custom_call.1} parent=1 // pred_check
      _
    $region11: #{tpu_custom_call.1} parent=1 // pred_check_branch
      %36 = sbr.rel (0) target = $region13
    $region12: #{tpu_custom_call.1} parent=1 // pred_region
      _
    $region13: #{tpu_custom_call.1} parent=1 // pred_fallthru
      _
    // Predicated region
    $region14: #{tpu_custom_call.1} parent=1 // pred_check
      _
    $region15: #{tpu_custom_call.1} parent=1 // pred_check_branch
      %38 = sbr.rel (0) target = $region17
    $region16: #{tpu_custom_call.1} parent=1 // pred_region
      %40 = dma.done [#allocation3], 128
    $region17: #{tpu_custom_call.1} parent=1 // pred_fallthru
      _
    // Predicated region
    $region18: #{tpu_custom_call.1} parent=1 // pred_check
      _
    $region19: #{tpu_custom_call.1} parent=1 // pred_check_branch
      %42 = sbr.rel (0) target = $region21
    $region20: #{tpu_custom_call.1} parent=1 // pred_region
      %44 = dma.done [#allocation6], 2048
    $region21: #{tpu_custom_call.1} parent=1 // pred_fallthru
      _
    %v45 = vld [vmem:[#allocation2] sm:$0xff]
    %v46 = vld [vmem:[#allocation5] sm:$0xff]
    %v47 = vld [vmem:[#allocation5 + $0x8] sm:$0xff]
    %v48 = vld [vmem:[#allocation5 + $0x10] sm:$0xff]
    %v49 = vld [vmem:[#allocation5 + $0x18] sm:$0xff]
    %v50 = vld [vmem:[#allocation5 + $0x20] sm:$0xff]
    %v51 = vld [vmem:[#allocation5 + $0x28] sm:$0xff]
    %v52 = vld [vmem:[#allocation5 + $0x30] sm:$0xff]
    %v53 = vld [vmem:[#allocation5 + $0x38] sm:$0xff]
    %v54 = vld [vmem:[#allocation5 + $0x40] sm:$0xff]
    %v55 = vld [vmem:[#allocation5 + $0x48] sm:$0xff]
    %v56 = vld [vmem:[#allocation5 + $0x50] sm:$0xff]
    %v57 = vld [vmem:[#allocation5 + $0x58] sm:$0xff]
    %v58 = vld [vmem:[#allocation5 + $0x60] sm:$0xff]
    %v59 = vld [vmem:[#allocation5 + $0x68] sm:$0xff]
    %v60 = vld [vmem:[#allocation5 + $0x70] sm:$0xff]
    %v61 = vld [vmem:[#allocation5 + $0x78] sm:$0xff]
    %v62 = vld [vmem:[%s2] sm:$0x1]
    %v64 = vperm.slane %v62, 0
    %66 = vmatpush.xpose.msra.mxu0 %v61
    %67 = vmatpush.xpose.msra.mxu0 %v60
    %68 = vmatpush.xpose.msra.mxu0 %v59
    %69 = vmatpush.xpose.msra.mxu0 %v58
    %70 = vmatpush.xpose.msra.mxu0 %v57
    %71 = vmatpush.xpose.msra.mxu0 %v56
    %72 = vmatpush.xpose.msra.mxu0 %v55
    %73 = vmatpush.xpose.msra.mxu0 %v54
    %74 = vmatpush.xpose.msra.mxu0 %v53
    %75 = vmatpush.xpose.msra.mxu0 %v52
    %76 = vmatpush.xpose.msra.mxu0 %v51
    %77 = vmatpush.xpose.msra.mxu0 %v50
    %78 = vmatpush.xpose.msra.mxu0 %v49
    %79 = vmatpush.xpose.msra.mxu0 %v48
    %80 = vmatpush.xpose.msra.mxu0 %v47
    %81 = vmatpush.xpose.msra.mxu0 %v46
    %82 = vmatmul.f32.gmra.mxu0 %v45
    %v83 = vpop.f32.mrf.mxu0
    %v84 = vadd.f32 %v64, %v83
    %85 = vdwg.mxu0
    %86 = vst [vmem:[#allocation7] sm:$0xff] %v84
    // Predicated region
    $region22: #{tpu_custom_call.1} parent=1 // pred_check
      _
    $region23: #{tpu_custom_call.1} parent=1 // pred_check_branch
      %88 = sbr.rel (0) target = $region25
    $region24: #{tpu_custom_call.1} parent=1 // pred_region
      %90 = vsyncadd [#allocation4], 0
      %s92 = sshll.u32 [#allocation7], 4
      %s93 = int_to_ptr.vmem [resolvable:$true] %s92
      %s94 = sshll.u32 %s3, 4
      %s95 = int_to_ptr.hbm [resolvable:$true] %s94
      %97 = dma.vmem_to_hbm [thread:$0]  %s93, 128, %s95, [#allocation4]
    $region25: #{tpu_custom_call.1} parent=1 // pred_fallthru
      _
    // Predicated region
    $region26: #{tpu_custom_call.1} parent=1 // pred_check
      _
    $region27: #{tpu_custom_call.1} parent=1 // pred_check_branch
      %99 = sbr.rel (0) target = $region29
    $region28: #{tpu_custom_call.1} parent=1 // pred_region
      %101 = dma.done [#allocation4], 128
    $region29: #{tpu_custom_call.1} parent=1 // pred_fallthru
      _
    %102 = vsyncpa [#allocation3], 1
    %103 = vsyncpa [#allocation6], 1
    %104 = vsyncpa [#allocation4], 1

</llo_original>
